<compile_context>
chip_gen: v7x
topology: tpu7x:2x2x1
jax: 0.10.0
libtpu: 0.0.40
codegen_flags: <defaults>
</compile_context>

<pallas_src>
import math
from typing import NamedTuple

import jax
import jax.numpy as jnp
from jax import lax
from jax.experimental import pallas as pl
from jax.experimental.pallas import tpu as pltpu


def _round_up(x, m):
    return (x + m - 1) // m * m


def _vmem_capacity_bytes():
    """Physical VMEM per TensorCore (v5e/v6e: 128 MiB, v7x: 64 MiB)."""
    try:
        info = pltpu.get_tpu_info()
        for attr in ("vmem_capacity_bytes", "vmem_size_bytes", "vmem_bytes"):
            v = getattr(info, attr, None)
            if v:
                return int(v)
    except Exception:
        pass
    return 64 * 1024 * 1024  # conservative: assume v7x per-TC VMEM


class PGcnGraph(NamedTuple):
    g_pad: jax.Array   # (n_pad_m, n_pad_k) padded graph, bf16
    n: int             # num_users + num_items
    n_pad_m: int       # rows padded to multiple of tm
    n_pad_k: int       # cols padded to multiple of tk
    tm: int
    tk: int
    p_resident: bool   # keep all of P VMEM-resident inside the kernel
    vmem_limit: int


def _plan_tiles(n, d):
    """Pick (n_pad_m, n_pad_k, tm, tk, p_resident, vmem_budget) per chip."""
    budget = min(int(_vmem_capacity_bytes() * 0.6), 96 * 1024 * 1024)

    # Large K tile (lane dim of a G tile) to amortize the ~0.35us per-grid-step
    # overhead; bigger on v5e/v6e (128 MiB VMEM) than on v7x (64 MiB).
    tk_target = 4096 if budget > 48 * 1024 * 1024 else 2048
    tk = min(tk_target, _round_up(n, 128))
    n_pad_k = _round_up(n, tk)

    # Row tile: 512 target, shrunk until there are >= 2 row tiles (when
    # possible) so the "parallel" row axis shards across both v7x TensorCores.
    tm = 512
    while tm > 8 and _round_up(n, tm) // tm < 2:
        tm //= 2
    n_pad_m = _round_up(n, tm)

    # Double-buffered working set: bf16 G tiles, bf16 P, bf16 out, f32 acc.
    g_db = 2 * tm * tk * 2
    out_db = 2 * tm * d * 2 + tm * d * 4
    p_res_db = 2 * n_pad_k * d * 2
    p_resident = (g_db + out_db + p_res_db) <= budget
    return n_pad_m, n_pad_k, tm, tk, p_resident, budget


def prepare_pgcn_graph(graph, embedding_dim, graph_dtype=jnp.bfloat16):
    """Pad + cast the (static) normalized adjacency ONCE per graph.

    Hoisted out of the forward pass: doing this every forward costs roughly
    an extra 1.5 G-sized HBM passes in XLA before the kernels even start.
    """
    n = graph.shape[0]
    assert graph.shape == (n, n)
    n_pad_m, n_pad_k, tm, tk, p_resident, budget = _plan_tiles(n, embedding_dim)
    g = jnp.zeros((n_pad_m, n_pad_k), graph_dtype)
    g = g.at[:n, :n].set(graph.astype(graph_dtype))
    return PGcnGraph(g, n, n_pad_m, n_pad_k, tm, tk, p_resident, int(budget))


# ---------------------------------------------------------------------------
# Kernel 1: one LightGCN propagation layer  out = G @ P   (tiled, f32 accum)
# ---------------------------------------------------------------------------
def _lgn_layer_kernel(g_ref, p_ref, out_ref, acc_ref):
    k = pl.program_id(1)
    tk = g_ref.shape[1]

    @pl.when(k == 0)
    def _():
        acc_ref[...] = jnp.zeros_like(acc_ref)

    if p_ref.shape[0] == tk:
        # streamed (tk, d) slab (or resident table with a single K tile)
        p_blk = p_ref[...]
    else:
        # P fully VMEM-resident: slice the K slab in-kernel (no re-DMA per row tile)
        k_start = pl.multiple_of(k * tk, tk)
        p_blk = p_ref[pl.ds(k_start, tk), :]

    acc_ref[...] += jnp.dot(g_ref[...], p_blk,                 # bf16 x bf16 on MXU
                            preferred_element_type=jnp.float32)  # f32 accumulation

    @pl.when(k == pl.num_programs(1) - 1)
    def _():
        out_ref[...] = acc_ref[...].astype(out_ref.dtype)      # single bf16 cast


def lgn_layer(graph_pad, p_pad, *, tm, tk, p_resident, vmem_limit):
    n_pad_m, n_pad_k = graph_pad.shape
    d = p_pad.shape[1]
    assert p_pad.shape[0] == n_pad_k
    assert n_pad_m % tm == 0 and n_pad_k % tk == 0
    grid = (n_pad_m // tm, n_pad_k // tk)

    if p_resident:
        # whole activation table resident in VMEM for the entire grid
        p_spec = pl.BlockSpec((n_pad_k, d), lambda i, k: (0, 0))
    else:
        p_spec = pl.BlockSpec((tk, d), lambda i, k: (k, 0))

    return pl.pallas_call(
        _lgn_layer_kernel,
        out_shape=jax.ShapeDtypeStruct((n_pad_m, d), jnp.bfloat16),
        grid_spec=pltpu.PrefetchScalarGridSpec(
            num_scalar_prefetch=0,
            grid=grid,
            in_specs=[
                pl.BlockSpec((tm, tk), lambda i, k: (i, k)),   # G tile (streamed)
                p_spec,                                        # P (resident / slab)
            ],
            out_specs=pl.BlockSpec((tm, d), lambda i, k: (i, 0)),
            scratch_shapes=[pltpu.VMEM((tm, d), jnp.float32)],
        ),
        compiler_params=pltpu.CompilerParams(
            dimension_semantics=("parallel", "arbitrary"),
            vmem_limit_bytes=int(vmem_limit)),
    )(graph_pad, p_pad)


# ---------------------------------------------------------------------------
# Kernel 2: batched row gather  out[i] = table[idx[i]]
#   Table stays in HBM (pl.ANY); indices are scalar-prefetched into SMEM; each
#   requested row is fetched with a double-buffered manual DMA straight into
#   the VMEM output block.  No whole-table copy, no VMEM size cap on N.
# ---------------------------------------------------------------------------
def _gather_kernel(idx_ref, table_ref, out_ref, sem_ref):
    r = out_ref.shape[0]

    def copy(i, slot):
        return pltpu.make_async_copy(
            table_ref.at[pl.ds(idx_ref[i], 1), :],
            out_ref.at[pl.ds(i, 1), :],
            sem_ref.at[slot])

    copy(0, 0).start()

    def body(i, carry):
        slot = i % 2

        @pl.when(i + 1 < r)
        def _():
            copy(i + 1, 1 - slot).start()

        copy(i, slot).wait()
        return carry

    lax.fori_loop(0, r, body, 0)


def gather_rows(table, idx):
    n, d = table.shape
    r = idx.shape[0]
    return pl.pallas_call(
        _gather_kernel,
        out_shape=jax.ShapeDtypeStruct((r, d), table.dtype),
        grid_spec=pltpu.PrefetchScalarGridSpec(
            num_scalar_prefetch=1,
            grid=(1,),
            in_specs=[pl.BlockSpec(memory_space=pl.ANY)],       # table stays in HBM
            out_specs=pl.BlockSpec((r, d), lambda i, idx: (0, 0)),
            scratch_shapes=[pltpu.SemaphoreType.DMA((2,))],
        ),
        compiler_params=pltpu.CompilerParams(
            dimension_semantics=("arbitrary",)),
    )(idx.astype(jnp.int32), table)


# ---------------------------------------------------------------------------
# PGcn forward (glue + kernels)
# ---------------------------------------------------------------------------
def pgcn_forward(pg: PGcnGraph, user_pref, item_pref, n_layers,
                 users, adjacent_items, weak_items, strong_items):
    num_users, d = user_pref.shape
    num_items = item_pref.shape[0]
    n = num_users + num_items
    assert n == pg.n

    # preference = cat([user_pref, item_pref]); f32 running sum in the wrapper.
    p0 = jnp.concatenate([user_pref.astype(jnp.float32),
                          item_pref.astype(jnp.float32)], axis=0)      # (n, d)
    acc = p0

    # bf16 activations for the bandwidth-bound propagation kernel, padded to
    # the graph's K (column) padding.  Padded rows stay zero.
    p_bf16 = jnp.zeros((pg.n_pad_k, d), jnp.bfloat16).at[:n].set(
        p0.astype(jnp.bfloat16))

    # LightGCN propagation: one tiled G @ P pass per layer; the cheap N x D
    # layer accumulation / mean stays in XLA glue (f32).
    for _ in range(n_layers):
        p_out = lgn_layer(pg.g_pad, p_bf16, tm=pg.tm, tk=pg.tk,
                          p_resident=pg.p_resident, vmem_limit=pg.vmem_limit)
        acc = acc + p_out[:n].astype(jnp.float32)
        p_bf16 = jnp.zeros((pg.n_pad_k, d), jnp.bfloat16).at[:n].set(p_out[:n])

    merged = acc * (1.0 / float(n_layers + 1))                          # (n, d) f32

    # Single batched gather directly from `merged`: user rows use their index,
    # item rows use index + num_users (equivalent to the users_/items_ split).
    nu = jnp.int32(num_users)
    idx = jnp.concatenate([
        users.astype(jnp.int32),
        adjacent_items.astype(jnp.int32) + nu,
        weak_items.astype(jnp.int32) + nu,
        strong_items.astype(jnp.int32) + nu,
    ])
    gathered = gather_rows(merged, idx)

    b0 = users.shape[0]
    b1 = adjacent_items.shape[0]
    b2 = weak_items.shape[0]
    b3 = strong_items.shape[0]
    users_pre_embed = gathered[:b0]
    adj_items_pre_embed = gathered[b0:b0 + b1]
    weak_items_pre_embed = gathered[b0 + b1:b0 + b1 + b2]
    strong_items_pre_embed = gathered[b0 + b1 + b2:b0 + b1 + b2 + b3]
    return (users_pre_embed, adj_items_pre_embed,
            weak_items_pre_embed, strong_items_pre_embed)


# pure-JAX reference (full f32) for correctness check
def pgcn_forward_ref(graph, user_pref, item_pref, n_layers,
                     users, adjacent_items, weak_items, strong_items):
    num_users = user_pref.shape[0]
    p = jnp.concatenate([user_pref, item_pref], axis=0)
    all_p = [p]
    for _ in range(n_layers):
        p = jnp.dot(graph, p, precision=jax.lax.Precision.HIGHEST)
        all_p.append(p)
    merged = jnp.mean(jnp.stack(all_p, axis=-1), axis=-1)
    u, it = merged[:num_users], merged[num_users:]
    return u[users], it[adjacent_items], it[weak_items], it[strong_items]


if __name__ == "__main__":
    # small synthetic "dataset"
    num_users = 12
    num_items = 20
    embedding_dim = 32
    num_community = 16
    n_layers = 2
    batch = 8
    n_nodes = num_users + num_items

    key = jax.random.PRNGKey(0)
    k_graph, k_u, k_i, k_users, k_adj, k_weak, k_strong = jax.random.split(key, 7)

    # bipartite interaction matrix R (num_users, num_items), ensure no empty rows/cols
    r = (jax.random.uniform(k_graph, (num_users, num_items)) < 0.3).astype(jnp.float32)
    r = r.at[jnp.arange(num_users), jnp.arange(num_users) % num_items].set(1.0)
    r = r.at[jnp.arange(num_items) % num_users, jnp.arange(num_items)].set(1.0)

    # dense symmetric-normalized adjacency  A = [[0, R], [R^T, 0]],  G = D^-1/2 A D^-1/2
    a = jnp.zeros((n_nodes, n_nodes), jnp.float32)
    a = a.at[:num_users, num_users:].set(r)
    a = a.at[num_users:, :num_users].set(r.T)
    deg = a.sum(axis=1)
    d_inv_sqrt = jnp.where(deg > 0, 1.0 / jnp.sqrt(jnp.maximum(deg, 1e-12)), 0.0)
    graph = d_inv_sqrt[:, None] * a * d_inv_sqrt[None, :]

    # parameters: uniform(-stdv, stdv), stdv = 1/sqrt(num_community)
    stdv = 1.0 / math.sqrt(num_community)
    user_preference = jax.random.uniform(
        k_u, (num_users, embedding_dim), minval=-stdv, maxval=stdv, dtype=jnp.float32)
    item_preference = jax.random.uniform(
        k_i, (num_items, embedding_dim), minval=-stdv, maxval=stdv, dtype=jnp.float32)

    # forward-pass index inputs
    users = jax.random.randint(k_users, (batch,), 0, num_users, dtype=jnp.int32)
    adjacent_items = jax.random.randint(k_adj, (batch,), 0, num_items, dtype=jnp.int32)
    weak_items = jax.random.randint(k_weak, (batch,), 0, num_items, dtype=jnp.int32)
    strong_items = jax.random.randint(k_strong, (batch,), 0, num_items, dtype=jnp.int32)

    # graph padding + bf16 cast happens ONCE per (static) graph, not per forward
    pg = prepare_pgcn_graph(graph, embedding_dim)
    pg = PGcnGraph(jax.block_until_ready(pg.g_pad), *pg[1:])

    out = pgcn_forward(pg, user_preference, item_preference, n_layers,
                       users, adjacent_items, weak_items, strong_items)
    out = jax.block_until_ready(out)

    ref = pgcn_forward_ref(graph, user_preference, item_preference, n_layers,
                           users, adjacent_items, weak_items, strong_items)
    # tolerance accounts for bf16 graph / per-layer bf16 activation rounding
    # (f32 accumulation on the MXU); observed error is ~1e-3 at these magnitudes.
    for o, r_ in zip(out, ref):
        assert o.shape == r_.shape
        assert jnp.allclose(o, r_, atol=1e-2, rtol=1e-2), "mismatch vs reference"

    print("KERNEL_OK")
</pallas_src>

<mosaic_0001>
module attributes {stable_mosaic.version = 11 : i64} {
  func.func @_lgn_layer_kernel(%arg0: i32, %arg1: i32, %arg2: memref<16x128xbf16, #tpu.memory_space<vmem>>, %arg3: memref<128x32xbf16, #tpu.memory_space<vmem>>, %arg4: memref<16x32xbf16, #tpu.memory_space<vmem>>, %arg5: memref<16x32xf32, #tpu.memory_space<vmem>>) attributes {dimension_semantics = [#tpu.dimension_semantics<parallel>, #tpu.dimension_semantics<arbitrary>], iteration_bounds = array<i64: 2, 1>, scalar_prefetch = 0 : i64, scratch_operands = 1 : i64, tpu.core_type = #tpu.core_type<tc>, window_params = [{transform_indices = @transform_0, window_bounds = array<i64: 16, 128>}, {pipeline_mode = #tpu.pipeline_mode<synchronous>, transform_indices = @transform_1, window_bounds = array<i64: 128, 32>}, {transform_indices = @transform_2, window_bounds = array<i64: 16, 32>}]} {
    %c0_i32 = arith.constant 0 : i32
    %0 = arith.cmpi eq, %arg1, %c0_i32 : i32
    %1 = arith.extui %0 : i1 to i32
    %c0_i32_0 = arith.constant 0 : i32
    %2 = arith.cmpi ne, %1, %c0_i32_0 : i32
    scf.if %2 {
      %cst_10 = arith.constant 0.000000e+00 : f32
      %12 = vector.broadcast %cst_10 : f32 to vector<16x32xf32>
      %c0_11 = arith.constant 0 : index
      %c0_12 = arith.constant 0 : index
      %13 = vector.load %arg5[%c0_11, %c0_12] : memref<16x32xf32, #tpu.memory_space<vmem>>, vector<16x32xf32>
      tpu.vector_store %arg5[%c0_11, %c0_12], %12 {strides = array<i32>} : memref<16x32xf32, #tpu.memory_space<vmem>>, vector<16x32xf32>,
    } else {
    }
    %c0 = arith.constant 0 : index
    %c0_1 = arith.constant 0 : index
    %3 = vector.load %arg3[%c0, %c0_1] : memref<128x32xbf16, #tpu.memory_space<vmem>>, vector<128x32xbf16>
    %c0_2 = arith.constant 0 : index
    %c0_3 = arith.constant 0 : index
    %4 = vector.load %arg5[%c0_2, %c0_3] : memref<16x32xf32, #tpu.memory_space<vmem>>, vector<16x32xf32>
    %c0_4 = arith.constant 0 : index
    %c0_5 = arith.constant 0 : index
    %5 = vector.load %arg2[%c0_4, %c0_5] : memref<16x128xbf16, #tpu.memory_space<vmem>>, vector<16x128xbf16>
    %cst = arith.constant dense<0.000000e+00> : vector<16x32xf32>
    %6 = tpu.matmul %5, %3, %cst {dimension_numbers = #tpu.dot_dimension_numbers<[1], [0], [0], [1], [0, 0, 1, 1], [], []>} : vector<16x128xbf16>, vector<128x32xbf16>, vector<16x32xf32> -> vector<16x32xf32>
    %7 = arith.addf %4, %6 : vector<16x32xf32>
    %c0_6 = arith.constant 0 : index
    %c0_7 = arith.constant 0 : index
    %8 = vector.load %arg5[%c0_6, %c0_7] : memref<16x32xf32, #tpu.memory_space<vmem>>, vector<16x32xf32>
    tpu.vector_store %arg5[%c0_6, %c0_7], %7 {strides = array<i32>} : memref<16x32xf32, #tpu.memory_space<vmem>>, vector<16x32xf32>,
    %c0_i32_8 = arith.constant 0 : i32
    %9 = arith.cmpi eq, %arg1, %c0_i32_8 : i32
    %10 = arith.extui %9 : i1 to i32
    %c0_i32_9 = arith.constant 0 : i32
    %11 = arith.cmpi ne, %10, %c0_i32_9 : i32
    scf.if %11 {
      %c0_10 = arith.constant 0 : index
      %c0_11 = arith.constant 0 : index
      %12 = vector.load %arg5[%c0_10, %c0_11] : memref<16x32xf32, #tpu.memory_space<vmem>>, vector<16x32xf32>
      %13 = arith.truncf %12 : vector<16x32xf32> to vector<16x32xbf16>
      %c0_12 = arith.constant 0 : index
      %c0_13 = arith.constant 0 : index
      %14 = vector.load %arg4[%c0_12, %c0_13] : memref<16x32xbf16, #tpu.memory_space<vmem>>, vector<16x32xbf16>
      tpu.vector_store %arg4[%c0_12, %c0_13], %13 {strides = array<i32>} : memref<16x32xbf16, #tpu.memory_space<vmem>>, vector<16x32xbf16>,
    } else {
    }
    return
  }
  func.func @transform_0(%arg0: i32, %arg1: i32) -> (i32, i32) {
    %c0_i32 = arith.constant 0 : i32
    return %arg0, %arg1 : i32, i32
  }
  func.func @transform_1(%arg0: i32, %arg1: i32) -> (i32, i32) {
    %c0_i32 = arith.constant 0 : i32
    %c0_i32_0 = arith.constant 0 : i32
    %c0_i32_1 = arith.constant 0 : i32
    return %c0_i32, %c0_i32_0 : i32, i32
  }
  func.func @transform_2(%arg0: i32, %arg1: i32) -> (i32, i32) {
    %c0_i32 = arith.constant 0 : i32
    %c0_i32_0 = arith.constant 0 : i32
    return %arg0, %c0_i32 : i32, i32
  }
}

</mosaic_0001>

<llo_original>
// kernel: tpu_custom_call.1
$region0: #{tpu_custom_call.1}
  #allocation0 [shape = 'u32[]', space=smem, size = 0x4, offset = 0x4, fixed_abs, tag = 'smem constant byte address 0x4 - core index']
  #allocation1 [shape = 'u32[144,128]{1,0:T(1,128)}', space=vmem, size = 0x12000, scoped, tag = 'internal scratch']
  #allocation2 [shape = 'f32[16,32]{1,0:T(8,128)}', space=vmem, size = 0x2000, scoped, tag = 'scratch operand']
  %s0 = inlined_call_operand.vmem [shape: bf16[32,128], index: 0, kind: input, shape index: {}]
  %s1 = inlined_call_operand.vmem [shape: bf16[128,32], index: 1, kind: input, shape index: {}]
  %s2 = inlined_call_operand.hbm [shape: bf16[32,32], index: 2, kind: output, shape index: {}]
  %s3 = sld [smem:[#allocation0]]
  $region49: #{tpu_custom_call.1} parent=0
    _
  %s5 = ssub.s32 1, %s3
  %s6 = scalar_select 0, %s5, %s3
  $region1: #{tpu_custom_call.1} parent=0
    #allocation3 [shape = 'u8[8192]{0}', space=vmem, size = 0x2000, scoped, tag = 'output window, operand 0']
    #allocation4 [shape = 's32[2]{0}', space=sflag, size = 0x8, scoped, tag = 'scoped memory for tpu_custom_call.1']
    %7 = vsyncpa [#allocation4], 0
    %s8 = scalar_lea.sflag [#allocation4], 1
    %9 = vsyncpa %s8, 0
    loop: start=0, step=1, limit=4
    $region2: #{tpu_custom_call.1} parent=1 // loop_pre_header
      _
    $region3: #{tpu_custom_call.1} parent=1 // loop_header
      %s11 = sphi 0, %s15
      %p12 = scmp.ge.s32.totalorder %s11, 4
      %s18 = sphi 0, %s30
      %s19 = sphi 0, %s26
      %s20 = sphi 0, %s18
      %s21 = sphi 0, %s19
      %s22 = sphi 0, %s20
      %s23 = sphi 0, %s21
      %s35 = sphi 0, %s37
      %s38 = sphi 0, %s35
      %s39 = sphi 0, %s38
      %s55 = sphi 0, %s39
      %s59 = sphi 0, %s59
      %s61 = sphi 0, %s59
      %s62 = sphi 0, %s61
      %s76 = sphi 0, %s62
      %s82 = sphi 0, %s84
      %s85 = sphi 0, %s82
      %s86 = sphi 0, %s85
      %s102 = sphi 0, %s86
    $region4: #{tpu_custom_call.1} parent=1 // loop_header_branch
      %14 = sbr.rel (%p12) target = $region8
    $region5: #{tpu_custom_call.1} parent=1 // loop_body
      %s16 = ssub.s32 %s11, 1
      %s17 = ssub.s32 %s11, 2
      %s24 = sadd.s32 1, %s19
      %p25 = scmp.ge.s32.totalorder %s24, 1
      %s26 = scalar_select %p25, 0, %s24
      %s27 = sadd.s32 1, %s18
      %s28 = scalar_select %p25, %s27, %s18
      %p29 = scmp.ge.s32.totalorder %s28, 2
      %s30 = scalar_select %p29, 0, %s28
      %s31 = ssub.s32 %s18, %s30
      %s32 = ssub.s32 %s19, %s26
      %s33 = sor.u32 %s31, %s32
      %p34 = scmp.eq.s32.totalorder %s33, 0
      %s36 = sadd.s32 %s35, 1
      %s37 = scalar_select %p34, %s35, %s36
      %p40 = pneg %p34
      %p41 = scmp.eq.s32.totalorder %s11, 1
      %p42 = por %p40, %p41
      %p43 = scmp.ne.s32.totalorder %s35, %s38
      %p44 = scmp.eq.s32.totalorder %s11, 0
      %p45 = por %p43, %p44
      %p46 = scmp.ne.s32.totalorder %s35, %s38
      %p47 = scmp.eq.s32.totalorder %s16, 1
      %p48 = por %p46, %p47
      %p49 = scmp.ne.s32.totalorder %s38, %s39
      %p50 = scmp.eq.s32.totalorder %s16, 0
      %p51 = por %p49, %p50
      %p52 = scmp.ne.s32.totalorder %s38, %s39
      %p53 = scmp.eq.s32.totalorder %s17, 1
      %p54 = por %p52, %p53
      %p56 = scmp.ne.s32.totalorder %s39, %s55
      %p57 = scmp.eq.s32.totalorder %s17, 0
      %p58 = por %p56, %p57
      %s60 = sadd.s32 %s59, 1
      %p63 = scmp.eq.s32.totalorder %s11, 1
      %p64 = scmp.ne.s32.totalorder %s59, %s61
      %p65 = scmp.eq.s32.totalorder %s11, 0
      %p66 = por %p64, %p65
      %p67 = scmp.ne.s32.totalorder %s59, %s61
      %p68 = scmp.eq.s32.totalorder %s16, 1
      %p69 = por %p67, %p68
      %p70 = scmp.ne.s32.totalorder %s61, %s62
      %p71 = scmp.eq.s32.totalorder %s16, 0
      %p72 = por %p70, %p71
      %p73 = scmp.ne.s32.totalorder %s61, %s62
      %p74 = scmp.eq.s32.totalorder %s17, 1
      %p75 = por %p73, %p74
      %p77 = scmp.ne.s32.totalorder %s62, %s76
      %p78 = scmp.eq.s32.totalorder %s17, 0
      %p79 = por %p77, %p78
      %s80 = ssub.s32 %s18, %s30
      %p81 = scmp.eq.s32.totalorder %s80, 0
      %s83 = sadd.s32 %s82, 1
      %s84 = scalar_select %p81, %s82, %s83
      %p87 = pneg %p81
      %p88 = scmp.eq.s32.totalorder %s11, 1
      %p89 = por %p87, %p88
      %p90 = scmp.ne.s32.totalorder %s82, %s85
      %p91 = scmp.eq.s32.totalorder %s11, 0
      %p92 = por %p90, %p91
      %p93 = scmp.ne.s32.totalorder %s82, %s85
      %p94 = scmp.eq.s32.totalorder %s16, 1
      %p95 = por %p93, %p94
      %p96 = scmp.ne.s32.totalorder %s85, %s86
      %p97 = scmp.eq.s32.totalorder %s16, 0
      %p98 = por %p96, %p97
      %p99 = scmp.ne.s32.totalorder %s85, %s86
      %p100 = scmp.eq.s32.totalorder %s17, 1
      %p101 = por %p99, %p100
      %p103 = scmp.ne.s32.totalorder %s86, %s102
      %p104 = scmp.eq.s32.totalorder %s17, 0
      %p105 = por %p103, %p104
      %p106 = scmp.le.s32.totalorder 1, %s11
      %p107 = scmp.lt.s32.totalorder %s11, 3
      %p108 = pnand %p106, %p107
      %p109 = pneg %p108
      // Predicated region
      $region9: #{tpu_custom_call.1} parent=5 // pred_check
        _
      $region10: #{tpu_custom_call.1} parent=5 // pred_check_branch
        %111 = sbr.rel (%p108) target = $region12
      $region11: #{tpu_custom_call.1} parent=5 // pred_region
        %s112 = ssub.s32 %s11, 1
        // Predicated region
        $region13: #{tpu_custom_call.1} parent=11 // pred_check
          %p113 = pneg %p72
        $region14: #{tpu_custom_call.1} parent=11 // pred_check_branch
          %115 = sbr.rel (%p113) target = $region16
        $region15: #{tpu_custom_call.1} parent=11 // pred_region
          _
        $region16: #{tpu_custom_call.1} parent=11 // pred_fallthru
          _
      $region12: #{tpu_custom_call.1} parent=5 // pred_fallthru
        _
      %p116 = scmp.lt.s32.totalorder %s11, 2
      // Predicated region
      $region17: #{tpu_custom_call.1} parent=5 // pred_check
        %p117 = pneg %p116
      $region18: #{tpu_custom_call.1} parent=5 // pred_check_branch
        %119 = sbr.rel (%p117) target = $region20
      $region19: #{tpu_custom_call.1} parent=5 // pred_region
        // Predicated region
        $region21: #{tpu_custom_call.1} parent=19 // pred_check
          %p120 = pneg %p45
        $region22: #{tpu_custom_call.1} parent=19 // pred_check_branch
          %122 = sbr.rel (%p120) target = $region24
        $region23: #{tpu_custom_call.1} parent=19 // pred_region
          %s123 = smul.u32 2, %s18
          %p124 = scmp.lt.s32.totalorder %s123, 3
          %s125 = scalar_select %p124, %s123, 3
          %p126 = scmp.lt.s32.totalorder %s19, 0
          %s127 = scalar_select %p126, %s19, 0
          %s128 = sadd.s32 %s127, %s125
          %s129 = smul.addr %s128, 4
          %s130 = scalar_lea.vmem %s0, %s129
          %s131 = smul.u32 2, %s18
        $region24: #{tpu_custom_call.1} parent=19 // pred_fallthru
          _
      $region20: #{tpu_custom_call.1} parent=5 // pred_fallthru
        _
      %p132 = scmp.le.s32.totalorder 1, %s11
      %p133 = scmp.lt.s32.totalorder %s11, 3
      %p134 = pnand %p132, %p133
      %p135 = pneg %p134
      // Predicated region
      $region25: #{tpu_custom_call.1} parent=5 // pred_check
        _
      $region26: #{tpu_custom_call.1} parent=5 // pred_check_branch
        %137 = sbr.rel (%p134) target = $region28
      $region27: #{tpu_custom_call.1} parent=5 // pred_region
        %s138 = ssub.s32 %s11, 1
        %s139 = smul.u32 2, %s20
        %p140 = scmp.lt.s32.totalorder %s139, 3
        %s141 = scalar_select %p140, %s139, 3
        %p142 = scmp.lt.s32.totalorder %s21, 0
        %s143 = scalar_select %p142, %s21, 0
        %s144 = sadd.s32 %s143, %s141
        %s145 = smul.addr %s144, 4
        %s146 = scalar_lea.vmem %s0, %s145
        %p147 = pneg %p51
        %p148 = pneg %p48
        %p149 = pneg %p72
        %p150 = pneg %p69
        %p151 = pneg %p98
        %p152 = pneg %p95
        %s153 = sand.u32 %s85, 1
        %s154 = scalar_lea.sflag [#allocation4], %s153
        %s155 = sand.u32 %s85, 1
        %s156 = smul.addr %s155, 8
        %s157 = scalar_lea.vmem [#allocation3], %s156
        %s158 = smul.u32 2, %s20
        %p159 = scmp.lt.s32.totalorder %s158, 3
        %s160 = scalar_select %p159, %s158, 3
        %p161 = scmp.lt.s32.totalorder %s21, 0
        %s162 = scalar_select %p161, %s21, 0
        %s163 = sadd.s32 %s162, %s160
        %s164 = smul.addr %s163, 4
        %s165 = scalar_lea.vmem %s0, %s164
        %s166 = smul.u32 2, %s20
        %s167 = smul.u32 2, %s20
        %p169 = scmp.eq.s32.totalorder %s21, 0
        // Predicated region
        $region29: #{tpu_custom_call.1} parent=27 // pred_check
          %p170 = pneg %p169
        $region30: #{tpu_custom_call.1} parent=27 // pred_check_branch
          %172 = sbr.rel (%p170) target = $region32
        $region31: #{tpu_custom_call.1} parent=27 // pred_region
          %vm173 = vcmask 261120
          %174 = vst.msk [vmem:[#allocation2] sm:$0xff] %vm173, 0.0
          %175 = vst.msk [vmem:[#allocation2 + $0x8] sm:$0xff] %vm173, 0.0
        $region32: #{tpu_custom_call.1} parent=27 // pred_fallthru
          _
        %v176 = vld [vmem:[%s1] sm:$0xf]
        %v177 = vld [vmem:[%s1 + $0x4] sm:$0xf]
        %v178 = vld [vmem:[%s1 + $0x8] sm:$0xf]
        %v179 = vld [vmem:[%s1 + $0xc] sm:$0xf]
        %v180 = vld [vmem:[%s1 + $0x10] sm:$0xf]
        %v181 = vld [vmem:[%s1 + $0x14] sm:$0xf]
        %v182 = vld [vmem:[%s1 + $0x18] sm:$0xf]
        %v183 = vld [vmem:[%s1 + $0x1c] sm:$0xf]
        %v184 = vld [vmem:[%s1 + $0x20] sm:$0xf]
        %v185 = vld [vmem:[%s1 + $0x24] sm:$0xf]
        %v186 = vld [vmem:[%s1 + $0x28] sm:$0xf]
        %v187 = vld [vmem:[%s1 + $0x2c] sm:$0xf]
        %v188 = vld [vmem:[%s1 + $0x30] sm:$0xf]
        %v189 = vld [vmem:[%s1 + $0x34] sm:$0xf]
        %v190 = vld [vmem:[%s1 + $0x38] sm:$0xf]
        %v191 = vld [vmem:[%s1 + $0x3c] sm:$0xf]
        %v192 = vld [vmem:[#allocation2] sm:$0xff]
        %v193 = vld [vmem:[#allocation2 + $0x8] sm:$0xff]
        %v194 = vld [vmem:[%s165] sm:$0xf]
        %v195 = vld [vmem:[%s165 + $0x4] sm:$0xf]
        %v198 = vunpack.c.l.b16 %v194
        %v199 = vunpack.c.l.b16 %v195
        %v200 = vpack.c.b16 %v199, %v198
        %v218 = vunpack.c.l.b16 %v176
        %v219 = vunpack.c.l.b16 %v177
        %v220 = vunpack.c.l.b16 %v178
        %v221 = vunpack.c.l.b16 %v179
        %v222 = vunpack.c.l.b16 %v180
        %v223 = vunpack.c.l.b16 %v181
        %v224 = vunpack.c.l.b16 %v182
        %v225 = vunpack.c.l.b16 %v183
        %v226 = vunpack.c.l.b16 %v184
        %v227 = vunpack.c.l.b16 %v185
        %v228 = vunpack.c.l.b16 %v186
        %v229 = vunpack.c.l.b16 %v187
        %v230 = vunpack.c.l.b16 %v188
        %v231 = vunpack.c.l.b16 %v189
        %v232 = vunpack.c.l.b16 %v190
        %v233 = vunpack.c.l.b16 %v191
        %v234 = vpack.c.b16 %v219, %v218
        %v235 = vpack.c.b16 %v221, %v220
        %v236 = vpack.c.b16 %v223, %v222
        %v237 = vpack.c.b16 %v225, %v224
        %v238 = vpack.c.b16 %v227, %v226
        %v239 = vpack.c.b16 %v229, %v228
        %v240 = vpack.c.b16 %v231, %v230
        %v241 = vpack.c.b16 %v233, %v232
        %250 = vmatprep.subr.bf16.mxu0 0
        %251 = vmatpush1.bf16.msra.mxu0 %v234
        %252 = vmatprep.subr.bf16.mxu0 0
        %253 = vmatpush1.bf16.msra.mxu0 %v235
        %254 = vmatprep.subr.bf16.mxu0 0
        %255 = vmatpush1.bf16.msra.mxu0 %v236
        %256 = vmatprep.subr.bf16.mxu0 0
        %257 = vmatpush1.bf16.msra.mxu0 %v237
        %258 = vmatprep.subr.bf16.mxu0 0
        %259 = vmatpush1.bf16.msra.mxu0 %v238
        %260 = vmatprep.subr.bf16.mxu0 0
        %261 = vmatpush1.bf16.msra.mxu0 %v239
        %262 = vmatprep.subr.bf16.mxu0 0
        %263 = vmatpush1.bf16.msra.mxu0 %v240
        %264 = vmatprep.subr.bf16.mxu0 0
        %265 = vmatpush1.bf16.msra.mxu0 %v241
        %266 = vmatprep.subr.bf16.mxu0 0
        %267 = vmatpush1.bf16.msra.mxu0 0
        %268 = vmatprep.subr.bf16.mxu0 0
        %269 = vmatpush1.bf16.msra.mxu0 0
        %270 = vmatprep.subr.bf16.mxu0 0
        %271 = vmatpush1.bf16.msra.mxu0 0
        %272 = vmatprep.subr.bf16.mxu0 0
        %273 = vmatpush1.bf16.msra.mxu0 0
        %274 = vmatprep.subr.bf16.mxu0 0
        %275 = vmatpush1.bf16.msra.mxu0 0
        %276 = vmatprep.subr.bf16.mxu0 0
        %277 = vmatpush1.bf16.msra.mxu0 0
        %278 = vmatprep.subr.bf16.mxu0 0
        %279 = vmatpush1.bf16.msra.mxu0 0
        %280 = vmatprep.subr.bf16.mxu0 0
        %281 = vmatpush1.bf16.msra.mxu0 0
        %282 = vmatprep.mubr.bf16.mxu0 0
        %283 = vmatmul.mubr.bf16.gmra.mrb[0].mxu0 %v200
        %v284 = vpop.f32.mrb[0].mxu0
        %v285 = vadd.f32 0.0, %v284
        %v286 = vpop.f32.mrb[0].mxu0
        %v287 = vpop.f32.mrb[0].mxu0
        %v288 = vadd.f32 0.0, %v287
        %v289 = vpop.f32.mrb[0].mxu0
        %290 = vdwg.mxu0
        %v291 = vadd.f32 %v192, %v285
        %v292 = vadd.f32 %v193, %v288
        %vm293 = vcmask 261120
        %294 = vst.msk [vmem:[#allocation2] sm:$0xff] %vm293, %v291
        %295 = vst.msk [vmem:[#allocation2 + $0x8] sm:$0xff] %vm293, %v292
        // Predicated region
        $region33: #{tpu_custom_call.1} parent=27 // pred_check
          %p296 = pneg %p169
        $region34: #{tpu_custom_call.1} parent=27 // pred_check_branch
          %298 = sbr.rel (%p296) target = $region36
        $region35: #{tpu_custom_call.1} parent=27 // pred_region
          %v299 = vld [vmem:[#allocation2] sm:$0xff]
          %v300 = vld [vmem:[#allocation2 + $0x8] sm:$0xff]
          %v301 = vpack.c.bf16 %v300, %v299
          %v303 = vunpack.c.l.b16 %v301
          %v304 = vunpack.c.h.b16 %v301
          %v305 = vpack.c.b16 %v303, %v303
          %v306 = vpack.c.b16 %v304, %v304
          %vm309 = vcmask 257024
          %310 = vst.msk [vmem:[%s157] sm:$0xf] %vm309, %v305
          %311 = vst.msk [vmem:[%s157 + $0x4] sm:$0xf] %vm309, %v306
        $region36: #{tpu_custom_call.1} parent=27 // pred_fallthru
          _
        %s312 = sand.u32 %s85, 1
        %s313 = scalar_lea.sflag [#allocation4], %s312
        %s314 = sand.u32 %s85, 1
        %s315 = smul.addr %s314, 8
        %s316 = scalar_lea.vmem [#allocation3], %s315
        // Predicated region
        $region37: #{tpu_custom_call.1} parent=27 // pred_check
          %p317 = pneg %p95
        $region38: #{tpu_custom_call.1} parent=27 // pred_check_branch
          %319 = sbr.rel (%p317) target = $region40
        $region39: #{tpu_custom_call.1} parent=27 // pred_region
          %s320 = smul.u32 2, %s20
          %s322 = ssub.s32 128, 128
          %323 = vsyncadd %s313, %s322
          %s324 = smul.addr %s320, 64
          %s325 = scalar_lea.hbm %s2, %s324
          %s326 = sshll.u32 %s316, 4
          %s327 = int_to_ptr.vmem [resolvable:$true] %s326
          %332 = dma.vmem_to_hbm [thread:$0]  %s327, 128, %s325, %s313, 64, 64, 4
        $region40: #{tpu_custom_call.1} parent=27 // pred_fallthru
          _
      $region28: #{tpu_custom_call.1} parent=5 // pred_fallthru
        _
      %p333 = scmp.le.s32.totalorder 2, %s11
      // Predicated region
      $region41: #{tpu_custom_call.1} parent=5 // pred_check
        %p334 = pneg %p333
      $region42: #{tpu_custom_call.1} parent=5 // pred_check_branch
        %336 = sbr.rel (%p334) target = $region44
      $region43: #{tpu_custom_call.1} parent=5 // pred_region
        %s337 = ssub.s32 %s11, 2
        // Predicated region
        $region45: #{tpu_custom_call.1} parent=43 // pred_check
          %p338 = pneg %p101
        $region46: #{tpu_custom_call.1} parent=43 // pred_check_branch
          %340 = sbr.rel (%p338) target = $region48
        $region47: #{tpu_custom_call.1} parent=43 // pred_region
          %s341 = sand.u32 %s86, 1
          %s342 = scalar_lea.sflag [#allocation4], %s341
          %s343 = sand.u32 %s86, 1
          %s344 = smul.addr %s343, 8
          %s345 = scalar_lea.vmem [#allocation3], %s344
          %346 = dma.done %s342, 128
        $region48: #{tpu_custom_call.1} parent=43 // pred_fallthru
          _
      $region44: #{tpu_custom_call.1} parent=5 // pred_fallthru
        _
    $region6: #{tpu_custom_call.1} parent=1 // loop_footer
      %s15 = sadd.s32 1, %s11
    $region7: #{tpu_custom_call.1} parent=1 // loop_footer_branch
      %10 = sbr.rel target = $region3
    $region8: #{tpu_custom_call.1} parent=1 // loop_exit
      _
    %347 = vsyncpa [#allocation4], 1
    %s348 = scalar_lea.sflag [#allocation4], 1
    %349 = vsyncpa %s348, 1

</llo_original>
